<compile_context>
chip_gen: v7x
topology: tpu7x:2x2x1
jax: 0.10.0
libtpu: 0.0.40
codegen_flags: <defaults>
</compile_context>

<pallas_src>
from functools import partial

import jax
import jax.numpy as jnp
from jax.experimental import pallas as pl
from jax.experimental.pallas import tpu as pltpu

X_DIM = 2
T_DIM = 2
N_T = 4
Z_DIM = 1
OUT_DIM = 2
LAYERS = [128, 128, 128]
NEG_SLOPE = 0.2

K_IN = X_DIM + T_DIM + Z_DIM      # 5
K_PAD = 8                         # first-layer contraction padded 5 -> 8
OUT_PAD = 128                     # lane-dense output (2 -> 128), sliced off outside
DEFAULT_BLOCK_B = 1024            # batch rows per grid step (multiple of 8)
MIN_PALLAS_BATCH = 16             # below this, plain fused XLA beats a kernel launch


def _round_up(n, m):
    return ((n + m - 1) // m) * m


def _leaky_relu(h):
    return jnp.where(h > 0, h, NEG_SLOPE * h)


# ----------------------------------------------------------------------------- kernel
def mlp_kernel(h_ref,
               w1_ref, b1_ref,
               w2_ref, b2_ref,
               w3_ref, b3_ref,
               w4_ref, b4_ref,
               out_ref):
    # h_ref: (TB, K_PAD) f32 ; weights: bf16 (in, out) ; biases: f32 (1, out)
    h = h_ref[...].astype(jnp.bfloat16)

    a = jnp.dot(h, w1_ref[...], preferred_element_type=jnp.float32) + b1_ref[...]
    a = _leaky_relu(a)

    a = jnp.dot(a.astype(jnp.bfloat16), w2_ref[...],
                preferred_element_type=jnp.float32) + b2_ref[...]
    a = _leaky_relu(a)

    a = jnp.dot(a.astype(jnp.bfloat16), w3_ref[...],
                preferred_element_type=jnp.float32) + b3_ref[...]
    a = _leaky_relu(a)

    a = jnp.dot(a.astype(jnp.bfloat16), w4_ref[...],
                preferred_element_type=jnp.float32) + b4_ref[...]
    out_ref[...] = a.astype(out_ref.dtype)          # (TB, OUT_PAD) lane-dense store


# ----------------------------------------------------------------------------- params
def init_params(key):
    """PyTorch-semantics f32 parameters (weights stored transposed: (in, out))."""
    params = {}
    keys = jax.random.split(key, 10)
    params["emb"] = jax.random.normal(keys[0], (N_T, T_DIM), dtype=jnp.float32)
    dims = [K_IN] + LAYERS + [OUT_DIM]
    for i in range(4):
        fan_in, fan_out = dims[i], dims[i + 1]
        bound = 1.0 / float(fan_in) ** 0.5
        params[f"w{i+1}"] = jax.random.uniform(
            keys[1 + 2 * i], (fan_in, fan_out), minval=-bound, maxval=bound,
            dtype=jnp.float32)
        params[f"b{i+1}"] = jax.random.uniform(
            keys[2 + 2 * i], (1, fan_out), minval=-bound, maxval=bound,
            dtype=jnp.float32)
    return params


def pack_params(params):
    """Pad + cast params into the kernel layout (bf16 weights, padded K/out)."""
    packed = {"emb": params["emb"].astype(jnp.float32)}
    w1 = jnp.zeros((K_PAD, LAYERS[0]), jnp.float32).at[:K_IN].set(params["w1"])
    packed["w1"] = w1.astype(jnp.bfloat16)
    packed["b1"] = params["b1"].astype(jnp.float32)
    packed["w2"] = params["w2"].astype(jnp.bfloat16)
    packed["b2"] = params["b2"].astype(jnp.float32)
    packed["w3"] = params["w3"].astype(jnp.bfloat16)
    packed["b3"] = params["b3"].astype(jnp.float32)
    w4 = jnp.zeros((LAYERS[-1], OUT_PAD), jnp.float32).at[:, :OUT_DIM].set(params["w4"])
    packed["w4"] = w4.astype(jnp.bfloat16)
    b4 = jnp.zeros((1, OUT_PAD), jnp.float32).at[:, :OUT_DIM].set(params["b4"])
    packed["b4"] = b4
    return packed


# --------------------------------------------------------------------------- wrappers
def _mlp_bf16_jax(packed, h):
    """Plain-JAX path mirroring the kernel's precision pipeline. h: (B, K_PAD) f32."""
    a = jnp.dot(h.astype(jnp.bfloat16), packed["w1"],
                preferred_element_type=jnp.float32) + packed["b1"]
    a = _leaky_relu(a)
    a = jnp.dot(a.astype(jnp.bfloat16), packed["w2"],
                preferred_element_type=jnp.float32) + packed["b2"]
    a = _leaky_relu(a)
    a = jnp.dot(a.astype(jnp.bfloat16), packed["w3"],
                preferred_element_type=jnp.float32) + packed["b3"]
    a = _leaky_relu(a)
    a = jnp.dot(a.astype(jnp.bfloat16), packed["w4"],
                preferred_element_type=jnp.float32) + packed["b4"]
    return a


@partial(jax.jit, static_argnames=("block_b",))
def my_generator_forward(packed, x, t, z, block_b=DEFAULT_BLOCK_B):
    B = x.shape[0]
    z = z.reshape((B, Z_DIM))
    t_emb = packed["emb"][t]                                     # (B, 2) gather (glue)
    h = jnp.concatenate(
        [x.astype(jnp.float32), t_emb, z.astype(jnp.float32)], axis=1)   # (B, 5)
    h = jnp.pad(h, ((0, 0), (0, K_PAD - K_IN)))                  # (B, 8)

    if B < MIN_PALLAS_BATCH:
        # Kernel launch + DMA setup dominate at tiny B; fused XLA is faster.
        return _mlp_bf16_jax(packed, h)[:, :OUT_DIM]

    assert block_b % 8 == 0, "batch tile must be a multiple of 8 (f32 sublane)"
    tb = min(block_b, _round_up(B, 8))
    bp = _round_up(B, tb)
    if bp != B:
        h = jnp.pad(h, ((0, bp - B), (0, 0)))                    # pad last tile
    grid = (bp // tb,)

    const2d = lambda shape: pl.BlockSpec(shape, lambda i: (0, 0))  # VMEM-resident

    out = pl.pallas_call(
        mlp_kernel,
        out_shape=jax.ShapeDtypeStruct((bp, OUT_PAD), jnp.float32),
        grid=grid,
        in_specs=[
            pl.BlockSpec((tb, K_PAD), lambda i: (i, 0)),
            const2d(packed["w1"].shape), const2d(packed["b1"].shape),
            const2d(packed["w2"].shape), const2d(packed["b2"].shape),
            const2d(packed["w3"].shape), const2d(packed["b3"].shape),
            const2d(packed["w4"].shape), const2d(packed["b4"].shape),
        ],
        out_specs=pl.BlockSpec((tb, OUT_PAD), lambda i: (i, 0)),
        compiler_params=pltpu.CompilerParams(
            dimension_semantics=("parallel",),
            vmem_limit_bytes=32 * 1024 * 1024),
    )(h, packed["w1"], packed["b1"], packed["w2"], packed["b2"],
      packed["w3"], packed["b3"], packed["w4"], packed["b4"])

    return out[:B, :OUT_DIM]


# ------------------------------------------------------------------------- references
def reference_forward_bf16(packed, x, t, z):
    """Same precision pipeline as the kernel (tight correctness reference)."""
    B = x.shape[0]
    z = z.reshape((B, Z_DIM))
    t_emb = packed["emb"][t]
    h = jnp.concatenate([x.astype(jnp.float32), t_emb, z.astype(jnp.float32)], axis=1)
    h = jnp.pad(h, ((0, 0), (0, K_PAD - K_IN)))
    return _mlp_bf16_jax(packed, h)[:, :OUT_DIM]


def reference_forward_f32(params, x, t, z):
    """Pure-f32 PyTorch-semantics reference (loose sanity check vs. bf16 matmuls)."""
    B = x.shape[0]
    z = z.reshape((B, Z_DIM))
    t_emb = params["emb"][t]
    h = jnp.concatenate([x, t_emb, z], axis=1).astype(jnp.float32)
    for i in range(1, 4):
        h = h @ params[f"w{i}"] + params[f"b{i}"]
        h = _leaky_relu(h)
    return h @ params["w4"] + params["b4"]


if __name__ == "__main__":
    key = jax.random.PRNGKey(0)
    pkey, xkey, tkey, zkey = jax.random.split(key, 4)

    params = init_params(pkey)
    packed = pack_params(params)

    B = 64  # small batch, multiple of 8, large enough to take the Pallas path
    x = jax.random.normal(xkey, (B, X_DIM), dtype=jnp.float32)
    t = jax.random.randint(tkey, (B,), 0, N_T, dtype=jnp.int32)
    z = jax.random.normal(zkey, (B,), dtype=jnp.float32)  # reshaped to (B,1) inside

    out = my_generator_forward(packed, x, t, z)
    out = jax.block_until_ready(out)
    assert out.shape == (B, OUT_DIM), out.shape

    ref_exact = reference_forward_bf16(packed, x, t, z)   # same precision as kernel
    assert jnp.allclose(out, ref_exact, atol=1e-4, rtol=1e-4), (out, ref_exact)

    ref_f32 = reference_forward_f32(params, x, t, z)      # bf16-vs-f32 drift only
    assert jnp.allclose(out, ref_f32, atol=5e-2, rtol=5e-2), (out, ref_f32)

    print("KERNEL_OK")
</pallas_src>

<mosaic_0001>
module attributes {stable_mosaic.version = 11 : i64} {
  func.func @mlp_kernel(%arg0: i32, %arg1: memref<64x8xf32, #tpu.memory_space<vmem>>, %arg2: memref<8x128xbf16, #tpu.memory_space<vmem>>, %arg3: memref<1x128xf32, #tpu.memory_space<vmem>>, %arg4: memref<128x128xbf16, #tpu.memory_space<vmem>>, %arg5: memref<1x128xf32, #tpu.memory_space<vmem>>, %arg6: memref<128x128xbf16, #tpu.memory_space<vmem>>, %arg7: memref<1x128xf32, #tpu.memory_space<vmem>>, %arg8: memref<128x128xbf16, #tpu.memory_space<vmem>>, %arg9: memref<1x128xf32, #tpu.memory_space<vmem>>, %arg10: memref<64x128xf32, #tpu.memory_space<vmem>>) attributes {dimension_semantics = [#tpu.dimension_semantics<parallel>], iteration_bounds = array<i64: 1>, scalar_prefetch = 0 : i64, scratch_operands = 0 : i64, tpu.core_type = #tpu.core_type<tc>, window_params = [{transform_indices = @transform_0, window_bounds = array<i64: 64, 8>}, {pipeline_mode = #tpu.pipeline_mode<synchronous>, transform_indices = @transform_1, window_bounds = array<i64: 8, 128>}, {pipeline_mode = #tpu.pipeline_mode<synchronous>, transform_indices = @transform_2, window_bounds = array<i64: 1, 128>}, {pipeline_mode = #tpu.pipeline_mode<synchronous>, transform_indices = @transform_3, window_bounds = array<i64: 128, 128>}, {pipeline_mode = #tpu.pipeline_mode<synchronous>, transform_indices = @transform_4, window_bounds = array<i64: 1, 128>}, {pipeline_mode = #tpu.pipeline_mode<synchronous>, transform_indices = @transform_5, window_bounds = array<i64: 128, 128>}, {pipeline_mode = #tpu.pipeline_mode<synchronous>, transform_indices = @transform_6, window_bounds = array<i64: 1, 128>}, {pipeline_mode = #tpu.pipeline_mode<synchronous>, transform_indices = @transform_7, window_bounds = array<i64: 128, 128>}, {pipeline_mode = #tpu.pipeline_mode<synchronous>, transform_indices = @transform_8, window_bounds = array<i64: 1, 128>}, {transform_indices = @transform_9, window_bounds = array<i64: 64, 128>}]} {
    %c0 = arith.constant 0 : index
    %c0_0 = arith.constant 0 : index
    %0 = vector.load %arg1[%c0, %c0_0] : memref<64x8xf32, #tpu.memory_space<vmem>>, vector<64x8xf32>
    %1 = arith.truncf %0 : vector<64x8xf32> to vector<64x8xbf16>
    %c0_1 = arith.constant 0 : index
    %c0_2 = arith.constant 0 : index
    %2 = vector.load %arg2[%c0_1, %c0_2] : memref<8x128xbf16, #tpu.memory_space<vmem>>, vector<8x128xbf16>
    %cst = arith.constant dense<0.000000e+00> : vector<64x128xf32>
    %3 = tpu.matmul %1, %2, %cst {dimension_numbers = #tpu.dot_dimension_numbers<[1], [0], [0], [1], [0, 0, 1, 1], [], []>} : vector<64x8xbf16>, vector<8x128xbf16>, vector<64x128xf32> -> vector<64x128xf32>
    %c0_3 = arith.constant 0 : index
    %c0_4 = arith.constant 0 : index
    %4 = vector.load %arg3[%c0_3, %c0_4] : memref<1x128xf32, #tpu.memory_space<vmem>>, vector<1x128xf32>
    %5 = vector.broadcast %4 : vector<1x128xf32> to vector<64x128xf32>
    %6 = arith.addf %3, %5 : vector<64x128xf32>
    %cst_5 = arith.constant 0.000000e+00 : f32
    %7 = vector.broadcast %cst_5 : f32 to vector<64x128xf32>
    %8 = arith.cmpf ogt, %6, %7 : vector<64x128xf32>
    %cst_6 = arith.constant 2.000000e-01 : f32
    %9 = vector.broadcast %cst_6 : f32 to vector<64x128xf32>
    %10 = arith.mulf %9, %6 : vector<64x128xf32>
    %11 = arith.select %8, %6, %10 : vector<64x128xi1>, vector<64x128xf32>
    %12 = arith.truncf %11 : vector<64x128xf32> to vector<64x128xbf16>
    %c0_7 = arith.constant 0 : index
    %c0_8 = arith.constant 0 : index
    %13 = vector.load %arg4[%c0_7, %c0_8] : memref<128x128xbf16, #tpu.memory_space<vmem>>, vector<128x128xbf16>
    %cst_9 = arith.constant dense<0.000000e+00> : vector<64x128xf32>
    %14 = tpu.matmul %12, %13, %cst_9 {dimension_numbers = #tpu.dot_dimension_numbers<[1], [0], [0], [1], [0, 0, 1, 1], [], []>} : vector<64x128xbf16>, vector<128x128xbf16>, vector<64x128xf32> -> vector<64x128xf32>
    %c0_10 = arith.constant 0 : index
    %c0_11 = arith.constant 0 : index
    %15 = vector.load %arg5[%c0_10, %c0_11] : memref<1x128xf32, #tpu.memory_space<vmem>>, vector<1x128xf32>
    %16 = vector.broadcast %15 : vector<1x128xf32> to vector<64x128xf32>
    %17 = arith.addf %14, %16 : vector<64x128xf32>
    %cst_12 = arith.constant 0.000000e+00 : f32
    %18 = vector.broadcast %cst_12 : f32 to vector<64x128xf32>
    %19 = arith.cmpf ogt, %17, %18 : vector<64x128xf32>
    %cst_13 = arith.constant 2.000000e-01 : f32
    %20 = vector.broadcast %cst_13 : f32 to vector<64x128xf32>
    %21 = arith.mulf %20, %17 : vector<64x128xf32>
    %22 = arith.select %19, %17, %21 : vector<64x128xi1>, vector<64x128xf32>
    %23 = arith.truncf %22 : vector<64x128xf32> to vector<64x128xbf16>
    %c0_14 = arith.constant 0 : index
    %c0_15 = arith.constant 0 : index
    %24 = vector.load %arg6[%c0_14, %c0_15] : memref<128x128xbf16, #tpu.memory_space<vmem>>, vector<128x128xbf16>
    %cst_16 = arith.constant dense<0.000000e+00> : vector<64x128xf32>
    %25 = tpu.matmul %23, %24, %cst_16 {dimension_numbers = #tpu.dot_dimension_numbers<[1], [0], [0], [1], [0, 0, 1, 1], [], []>} : vector<64x128xbf16>, vector<128x128xbf16>, vector<64x128xf32> -> vector<64x128xf32>
    %c0_17 = arith.constant 0 : index
    %c0_18 = arith.constant 0 : index
    %26 = vector.load %arg7[%c0_17, %c0_18] : memref<1x128xf32, #tpu.memory_space<vmem>>, vector<1x128xf32>
    %27 = vector.broadcast %26 : vector<1x128xf32> to vector<64x128xf32>
    %28 = arith.addf %25, %27 : vector<64x128xf32>
    %cst_19 = arith.constant 0.000000e+00 : f32
    %29 = vector.broadcast %cst_19 : f32 to vector<64x128xf32>
    %30 = arith.cmpf ogt, %28, %29 : vector<64x128xf32>
    %cst_20 = arith.constant 2.000000e-01 : f32
    %31 = vector.broadcast %cst_20 : f32 to vector<64x128xf32>
    %32 = arith.mulf %31, %28 : vector<64x128xf32>
    %33 = arith.select %30, %28, %32 : vector<64x128xi1>, vector<64x128xf32>
    %34 = arith.truncf %33 : vector<64x128xf32> to vector<64x128xbf16>
    %c0_21 = arith.constant 0 : index
    %c0_22 = arith.constant 0 : index
    %35 = vector.load %arg8[%c0_21, %c0_22] : memref<128x128xbf16, #tpu.memory_space<vmem>>, vector<128x128xbf16>
    %cst_23 = arith.constant dense<0.000000e+00> : vector<64x128xf32>
    %36 = tpu.matmul %34, %35, %cst_23 {dimension_numbers = #tpu.dot_dimension_numbers<[1], [0], [0], [1], [0, 0, 1, 1], [], []>} : vector<64x128xbf16>, vector<128x128xbf16>, vector<64x128xf32> -> vector<64x128xf32>
    %c0_24 = arith.constant 0 : index
    %c0_25 = arith.constant 0 : index
    %37 = vector.load %arg9[%c0_24, %c0_25] : memref<1x128xf32, #tpu.memory_space<vmem>>, vector<1x128xf32>
    %38 = vector.broadcast %37 : vector<1x128xf32> to vector<64x128xf32>
    %39 = arith.addf %36, %38 : vector<64x128xf32>
    %c0_26 = arith.constant 0 : index
    %c0_27 = arith.constant 0 : index
    %40 = vector.load %arg10[%c0_26, %c0_27] : memref<64x128xf32, #tpu.memory_space<vmem>>, vector<64x128xf32>
    tpu.vector_store %arg10[%c0_26, %c0_27], %39 {strides = array<i32>} : memref<64x128xf32, #tpu.memory_space<vmem>>, vector<64x128xf32>,
    return
  }
  func.func @transform_0(%arg0: i32) -> (i32, i32) {
    %c0_i32 = arith.constant 0 : i32
    %c0_i32_0 = arith.constant 0 : i32
    return %arg0, %c0_i32 : i32, i32
  }
  func.func @transform_1(%arg0: i32) -> (i32, i32) {
    %c0_i32 = arith.constant 0 : i32
    %c0_i32_0 = arith.constant 0 : i32
    %c0_i32_1 = arith.constant 0 : i32
    return %c0_i32, %c0_i32_0 : i32, i32
  }
  func.func @transform_2(%arg0: i32) -> (i32, i32) {
    %c0_i32 = arith.constant 0 : i32
    %c0_i32_0 = arith.constant 0 : i32
    %c0_i32_1 = arith.constant 0 : i32
    return %c0_i32, %c0_i32_0 : i32, i32
  }
  func.func @transform_3(%arg0: i32) -> (i32, i32) {
    %c0_i32 = arith.constant 0 : i32
    %c0_i32_0 = arith.constant 0 : i32
    %c0_i32_1 = arith.constant 0 : i32
    return %c0_i32, %c0_i32_0 : i32, i32
  }
  func.func @transform_4(%arg0: i32) -> (i32, i32) {
    %c0_i32 = arith.constant 0 : i32
    %c0_i32_0 = arith.constant 0 : i32
    %c0_i32_1 = arith.constant 0 : i32
    return %c0_i32, %c0_i32_0 : i32, i32
  }
  func.func @transform_5(%arg0: i32) -> (i32, i32) {
    %c0_i32 = arith.constant 0 : i32
    %c0_i32_0 = arith.constant 0 : i32
    %c0_i32_1 = arith.constant 0 : i32
    return %c0_i32, %c0_i32_0 : i32, i32
  }
  func.func @transform_6(%arg0: i32) -> (i32, i32) {
    %c0_i32 = arith.constant 0 : i32
    %c0_i32_0 = arith.constant 0 : i32
    %c0_i32_1 = arith.constant 0 : i32
    return %c0_i32, %c0_i32_0 : i32, i32
  }
  func.func @transform_7(%arg0: i32) -> (i32, i32) {
    %c0_i32 = arith.constant 0 : i32
    %c0_i32_0 = arith.constant 0 : i32
    %c0_i32_1 = arith.constant 0 : i32
    return %c0_i32, %c0_i32_0 : i32, i32
  }
  func.func @transform_8(%arg0: i32) -> (i32, i32) {
    %c0_i32 = arith.constant 0 : i32
    %c0_i32_0 = arith.constant 0 : i32
    %c0_i32_1 = arith.constant 0 : i32
    return %c0_i32, %c0_i32_0 : i32, i32
  }
  func.func @transform_9(%arg0: i32) -> (i32, i32) {
    %c0_i32 = arith.constant 0 : i32
    %c0_i32_0 = arith.constant 0 : i32
    return %arg0, %c0_i32 : i32, i32
  }
}

</mosaic_0001>

<llo_original>
// kernel: my_generator_forward.1
$region0: #{my_generator_forward.1}
  #allocation0 [shape = 'u32[]', space=smem, size = 0x4, offset = 0x4, fixed_abs, tag = 'smem constant byte address 0x4 - core index']
  #allocation1 [shape = 'u32[144,128]{1,0:T(1,128)}', space=vmem, size = 0x12000, scoped, tag = 'internal scratch']
  %s0 = inlined_call_operand.vmem [shape: f32[64,8], index: 0, kind: input, shape index: {}]
  %s1 = inlined_call_operand.vmem [shape: bf16[8,128], index: 1, kind: input, shape index: {}]
  %s2 = inlined_call_operand.vmem [shape: f32[1,128], index: 2, kind: input, shape index: {}]
  %s3 = inlined_call_operand.vmem [shape: bf16[128,128], index: 3, kind: input, shape index: {}]
  %s4 = inlined_call_operand.vmem [shape: f32[1,128], index: 4, kind: input, shape index: {}]
  %s5 = inlined_call_operand.vmem [shape: bf16[128,128], index: 5, kind: input, shape index: {}]
  %s6 = inlined_call_operand.vmem [shape: f32[1,128], index: 6, kind: input, shape index: {}]
  %s7 = inlined_call_operand.vmem [shape: bf16[128,128], index: 7, kind: input, shape index: {}]
  %s8 = inlined_call_operand.vmem [shape: f32[1,128], index: 8, kind: input, shape index: {}]
  %s9 = inlined_call_operand.vmem [shape: f32[64,128], index: 9, kind: output, shape index: {}]
  %s10 = sld [smem:[#allocation0]]
  $region46: #{my_generator_forward.1} parent=0
    _
  %s12 = ssub.s32 1, %s10
  %s13 = scalar_select 0, %s12, %s10
  // Predicated region
  $region2: #{my_generator_forward.1} parent=0 // pred_check
    _
  $region3: #{my_generator_forward.1} parent=0 // pred_check_branch
    %15 = sbr.rel (0) target = $region5
  $region4: #{my_generator_forward.1} parent=0 // pred_region
    _
  $region5: #{my_generator_forward.1} parent=0 // pred_fallthru
    _
  // Predicated region
  $region6: #{my_generator_forward.1} parent=0 // pred_check
    _
  $region7: #{my_generator_forward.1} parent=0 // pred_check_branch
    %17 = sbr.rel (0) target = $region9
  $region8: #{my_generator_forward.1} parent=0 // pred_region
    _
  $region9: #{my_generator_forward.1} parent=0 // pred_fallthru
    _
  // Predicated region
  $region10: #{my_generator_forward.1} parent=0 // pred_check
    _
  $region11: #{my_generator_forward.1} parent=0 // pred_check_branch
    %19 = sbr.rel (0) target = $region13
  $region12: #{my_generator_forward.1} parent=0 // pred_region
    _
  $region13: #{my_generator_forward.1} parent=0 // pred_fallthru
    _
  // Predicated region
  $region14: #{my_generator_forward.1} parent=0 // pred_check
    _
  $region15: #{my_generator_forward.1} parent=0 // pred_check_branch
    %21 = sbr.rel (0) target = $region17
  $region16: #{my_generator_forward.1} parent=0 // pred_region
    _
  $region17: #{my_generator_forward.1} parent=0 // pred_fallthru
    _
  // Predicated region
  $region18: #{my_generator_forward.1} parent=0 // pred_check
    _
  $region19: #{my_generator_forward.1} parent=0 // pred_check_branch
    %23 = sbr.rel (0) target = $region21
  $region20: #{my_generator_forward.1} parent=0 // pred_region
    _
  $region21: #{my_generator_forward.1} parent=0 // pred_fallthru
    _
  // Predicated region
  $region22: #{my_generator_forward.1} parent=0 // pred_check
    _
  $region23: #{my_generator_forward.1} parent=0 // pred_check_branch
    %25 = sbr.rel (0) target = $region25
  $region24: #{my_generator_forward.1} parent=0 // pred_region
    _
  $region25: #{my_generator_forward.1} parent=0 // pred_fallthru
    _
  // Predicated region
  $region26: #{my_generator_forward.1} parent=0 // pred_check
    _
  $region27: #{my_generator_forward.1} parent=0 // pred_check_branch
    %27 = sbr.rel (0) target = $region29
  $region28: #{my_generator_forward.1} parent=0 // pred_region
    _
  $region29: #{my_generator_forward.1} parent=0 // pred_fallthru
    _
  // Predicated region
  $region30: #{my_generator_forward.1} parent=0 // pred_check
    _
  $region31: #{my_generator_forward.1} parent=0 // pred_check_branch
    %29 = sbr.rel (0) target = $region33
  $region32: #{my_generator_forward.1} parent=0 // pred_region
    _
  $region33: #{my_generator_forward.1} parent=0 // pred_fallthru
    _
  // Predicated region
  $region34: #{my_generator_forward.1} parent=0 // pred_check
    _
  $region35: #{my_generator_forward.1} parent=0 // pred_check_branch
    %31 = sbr.rel (0) target = $region37
  $region36: #{my_generator_forward.1} parent=0 // pred_region
    _
  $region37: #{my_generator_forward.1} parent=0 // pred_fallthru
    _
  %v33 = vld [vmem:[%s0] sm:$0xff]
  %v34 = vld [vmem:[%s0 + $0x8] sm:$0xff]
  %v35 = vld [vmem:[%s0 + $0x10] sm:$0xff]
  %v36 = vld [vmem:[%s0 + $0x18] sm:$0xff]
  %v37 = vld [vmem:[%s0 + $0x20] sm:$0xff]
  %v38 = vld [vmem:[%s0 + $0x28] sm:$0xff]
  %v39 = vld [vmem:[%s0 + $0x30] sm:$0xff]
  %v40 = vld [vmem:[%s0 + $0x38] sm:$0xff]
  %v41 = vpack.c.bf16 %v34, %v33
  %v42 = vpack.c.bf16 %v36, %v35
  %v43 = vpack.c.bf16 %v38, %v37
  %v44 = vpack.c.bf16 %v40, %v39
  %v45 = vld [vmem:[%s1] sm:$0xf]
  %v46 = vld [vmem:[%s2] sm:$0x1]
  %v48 = vlaneseq
  %v49 = vshrl.u32 %v48, 7
  %v50 = vsub.s32 0, %v49
  %v51 = vrot.slane %v46, %v50
  %vm53 = vcmask 64512
  %v55 = vsel %vm53, %v41, 0
  %v58 = vsel %vm53, %v42, 0
  %v61 = vsel %vm53, %v43, 0
  %v64 = vsel %vm53, %v44, 0
  %vm66 = vcmask 1043456
  %v68 = vsel %vm66, %v45, 0
  %70 = vmatprep.subr.bf16.mxu0 0
  %71 = vmatpush1.bf16.msra.mxu0 %v68
  %72 = vmatprep.subr.bf16.mxu0 0
  %73 = vmatpush1.bf16.msra.mxu0 0
  %74 = vmatprep.subr.bf16.mxu0 0
  %75 = vmatpush1.bf16.msra.mxu0 0
  %76 = vmatprep.subr.bf16.mxu0 0
  %77 = vmatpush1.bf16.msra.mxu0 0
  %78 = vmatprep.subr.bf16.mxu0 0
  %79 = vmatpush1.bf16.msra.mxu0 0
  %80 = vmatprep.subr.bf16.mxu0 0
  %81 = vmatpush1.bf16.msra.mxu0 0
  %82 = vmatprep.subr.bf16.mxu0 0
  %83 = vmatpush1.bf16.msra.mxu0 0
  %84 = vmatprep.subr.bf16.mxu0 0
  %85 = vmatpush1.bf16.msra.mxu0 0
  %86 = vmatprep.subr.bf16.mxu0 0
  %87 = vmatpush1.bf16.msra.mxu0 0
  %88 = vmatprep.subr.bf16.mxu0 0
  %89 = vmatpush1.bf16.msra.mxu0 0
  %90 = vmatprep.subr.bf16.mxu0 0
  %91 = vmatpush1.bf16.msra.mxu0 0
  %92 = vmatprep.subr.bf16.mxu0 0
  %93 = vmatpush1.bf16.msra.mxu0 0
  %94 = vmatprep.subr.bf16.mxu0 0
  %95 = vmatpush1.bf16.msra.mxu0 0
  %96 = vmatprep.subr.bf16.mxu0 0
  %97 = vmatpush1.bf16.msra.mxu0 0
  %98 = vmatprep.subr.bf16.mxu0 0
  %99 = vmatpush1.bf16.msra.mxu0 0
  %100 = vmatprep.subr.bf16.mxu0 0
  %101 = vmatpush1.bf16.msra.mxu0 0
  %102 = vmatprep.mubr.bf16.mxu0 0
  %103 = vmatmul.mubr.bf16.gmra.mrb[0].mxu0 %v55
  %v104 = vpop.f32.mrb[0].mxu0
  %v105 = vadd.f32 %v51, %v104
  %v106 = vpop.f32.mrb[0].mxu0
  %v107 = vpop.f32.mrb[0].mxu0
  %v108 = vadd.f32 %v51, %v107
  %v109 = vpop.f32.mrb[0].mxu0
  %110 = vmatprep.mubr.bf16.mxu0 0
  %111 = vmatmul.mubr.bf16.gmra.mrb[0].mxu0 %v58
  %v112 = vpop.f32.mrb[0].mxu0
  %v113 = vadd.f32 %v51, %v112
  %v114 = vpop.f32.mrb[0].mxu0
  %v115 = vpop.f32.mrb[0].mxu0
  %v116 = vadd.f32 %v51, %v115
  %v117 = vpop.f32.mrb[0].mxu0
  %118 = vmatprep.mubr.bf16.mxu0 0
  %119 = vmatmul.mubr.bf16.gmra.mrb[0].mxu0 %v61
  %v120 = vpop.f32.mrb[0].mxu0
  %v121 = vadd.f32 %v51, %v120
  %v122 = vpop.f32.mrb[0].mxu0
  %v123 = vpop.f32.mrb[0].mxu0
  %v124 = vadd.f32 %v51, %v123
  %v125 = vpop.f32.mrb[0].mxu0
  %126 = vmatprep.mubr.bf16.mxu0 0
  %127 = vmatmul.mubr.bf16.gmra.mrb[0].mxu0 %v64
  %v128 = vpop.f32.mrb[0].mxu0
  %v129 = vadd.f32 %v51, %v128
  %v130 = vpop.f32.mrb[0].mxu0
  %v131 = vpop.f32.mrb[0].mxu0
  %v132 = vadd.f32 %v51, %v131
  %v133 = vpop.f32.mrb[0].mxu0
  %134 = vdwg.mxu0
  %vm135 = vcmp.gt.f32.partialorder %v105, 0.0
  %vm136 = vcmp.gt.f32.partialorder %v108, 0.0
  %vm137 = vcmp.gt.f32.partialorder %v113, 0.0
  %vm138 = vcmp.gt.f32.partialorder %v116, 0.0
  %vm139 = vcmp.gt.f32.partialorder %v121, 0.0
  %vm140 = vcmp.gt.f32.partialorder %v124, 0.0
  %vm141 = vcmp.gt.f32.partialorder %v129, 0.0
  %vm142 = vcmp.gt.f32.partialorder %v132, 0.0
  %v143 = vmul.f32 %v105, 0.2
  %v144 = vmul.f32 %v108, 0.2
  %v145 = vmul.f32 %v113, 0.2
  %v146 = vmul.f32 %v116, 0.2
  %v147 = vmul.f32 %v121, 0.2
  %v148 = vmul.f32 %v124, 0.2
  %v149 = vmul.f32 %v129, 0.2
  %v150 = vmul.f32 %v132, 0.2
  %v151 = vsel %vm135, %v105, %v143
  %v152 = vsel %vm136, %v108, %v144
  %v153 = vsel %vm137, %v113, %v145
  %v154 = vsel %vm138, %v116, %v146
  %v155 = vsel %vm139, %v121, %v147
  %v156 = vsel %vm140, %v124, %v148
  %v157 = vsel %vm141, %v129, %v149
  %v158 = vsel %vm142, %v132, %v150
  %v159 = vpack.c.bf16 %v152, %v151
  %v160 = vpack.c.bf16 %v154, %v153
  %v161 = vpack.c.bf16 %v156, %v155
  %v162 = vpack.c.bf16 %v158, %v157
  %v163 = vld [vmem:[%s3] sm:$0xf]
  %v164 = vld [vmem:[%s3 + $0x4] sm:$0xf]
  %v165 = vld [vmem:[%s3 + $0x8] sm:$0xf]
  %v166 = vld [vmem:[%s3 + $0xc] sm:$0xf]
  %v167 = vld [vmem:[%s3 + $0x10] sm:$0xf]
  %v168 = vld [vmem:[%s3 + $0x14] sm:$0xf]
  %v169 = vld [vmem:[%s3 + $0x18] sm:$0xf]
  %v170 = vld [vmem:[%s3 + $0x1c] sm:$0xf]
  %v171 = vld [vmem:[%s3 + $0x20] sm:$0xf]
  %v172 = vld [vmem:[%s3 + $0x24] sm:$0xf]
  %v173 = vld [vmem:[%s3 + $0x28] sm:$0xf]
  %v174 = vld [vmem:[%s3 + $0x2c] sm:$0xf]
  %v175 = vld [vmem:[%s3 + $0x30] sm:$0xf]
  %v176 = vld [vmem:[%s3 + $0x34] sm:$0xf]
  %v177 = vld [vmem:[%s3 + $0x38] sm:$0xf]
  %v178 = vld [vmem:[%s3 + $0x3c] sm:$0xf]
  %v179 = vld [vmem:[%s4] sm:$0x1]
  %v181 = vlaneseq
  %v182 = vshrl.u32 %v181, 7
  %v183 = vsub.s32 0, %v182
  %v184 = vrot.slane %v179, %v183
  %v202 = vunpack.c.l.b16 %v163
  %v203 = vunpack.c.l.b16 %v164
  %v204 = vunpack.c.l.b16 %v165
  %v205 = vunpack.c.l.b16 %v166
  %v206 = vunpack.c.l.b16 %v167
  %v207 = vunpack.c.l.b16 %v168
  %v208 = vunpack.c.l.b16 %v169
  %v209 = vunpack.c.l.b16 %v170
  %v210 = vunpack.c.l.b16 %v171
  %v211 = vunpack.c.l.b16 %v172
  %v212 = vunpack.c.l.b16 %v173
  %v213 = vunpack.c.l.b16 %v174
  %v214 = vunpack.c.l.b16 %v175
  %v215 = vunpack.c.l.b16 %v176
  %v216 = vunpack.c.l.b16 %v177
  %v217 = vunpack.c.l.b16 %v178
  %v218 = vpack.c.b16 %v203, %v202
  %v219 = vpack.c.b16 %v205, %v204
  %v220 = vpack.c.b16 %v207, %v206
  %v221 = vpack.c.b16 %v209, %v208
  %v222 = vpack.c.b16 %v211, %v210
  %v223 = vpack.c.b16 %v213, %v212
  %v224 = vpack.c.b16 %v215, %v214
  %v225 = vpack.c.b16 %v217, %v216
  %234 = vmatprep.subr.bf16.mxu0 0
  %235 = vmatpush1.bf16.msra.mxu0 %v218
  %236 = vmatprep.subr.bf16.mxu0 0
  %237 = vmatpush1.bf16.msra.mxu0 %v219
  %238 = vmatprep.subr.bf16.mxu0 0
  %239 = vmatpush1.bf16.msra.mxu0 %v220
  %240 = vmatprep.subr.bf16.mxu0 0
  %241 = vmatpush1.bf16.msra.mxu0 %v221
  %242 = vmatprep.subr.bf16.mxu0 0
  %243 = vmatpush1.bf16.msra.mxu0 %v222
  %244 = vmatprep.subr.bf16.mxu0 0
  %245 = vmatpush1.bf16.msra.mxu0 %v223
  %246 = vmatprep.subr.bf16.mxu0 0
  %247 = vmatpush1.bf16.msra.mxu0 %v224
  %248 = vmatprep.subr.bf16.mxu0 0
  %249 = vmatpush1.bf16.msra.mxu0 %v225
  %250 = vmatprep.subr.bf16.mxu0 0
  %251 = vmatpush1.bf16.msra.mxu0 0
  %252 = vmatprep.subr.bf16.mxu0 0
  %253 = vmatpush1.bf16.msra.mxu0 0
  %254 = vmatprep.subr.bf16.mxu0 0
  %255 = vmatpush1.bf16.msra.mxu0 0
  %256 = vmatprep.subr.bf16.mxu0 0
  %257 = vmatpush1.bf16.msra.mxu0 0
  %258 = vmatprep.subr.bf16.mxu0 0
  %259 = vmatpush1.bf16.msra.mxu0 0
  %260 = vmatprep.subr.bf16.mxu0 0
  %261 = vmatpush1.bf16.msra.mxu0 0
  %262 = vmatprep.subr.bf16.mxu0 0
  %263 = vmatpush1.bf16.msra.mxu0 0
  %264 = vmatprep.subr.bf16.mxu0 0
  %265 = vmatpush1.bf16.msra.mxu0 0
  %266 = vmatprep.mubr.bf16.mxu0 0
  %267 = vmatmul.mubr.bf16.gmra.mrb[0].mxu0 %v159
  %v268 = vpop.f32.mrb[0].mxu0
  %v269 = vadd.f32 %v184, %v268
  %v270 = vpop.f32.mrb[0].mxu0
  %v271 = vpop.f32.mrb[0].mxu0
  %v272 = vadd.f32 %v184, %v271
  %v273 = vpop.f32.mrb[0].mxu0
  %274 = vmatprep.mubr.bf16.mxu0 0
  %275 = vmatmul.mubr.bf16.gmra.mrb[0].mxu0 %v160
  %v276 = vpop.f32.mrb[0].mxu0
  %v277 = vadd.f32 %v184, %v276
  %v278 = vpop.f32.mrb[0].mxu0
  %v279 = vpop.f32.mrb[0].mxu0
  %v280 = vadd.f32 %v184, %v279
  %v281 = vpop.f32.mrb[0].mxu0
  %282 = vmatprep.mubr.bf16.mxu0 0
  %283 = vmatmul.mubr.bf16.gmra.mrb[0].mxu0 %v161
  %v284 = vpop.f32.mrb[0].mxu0
  %v285 = vadd.f32 %v184, %v284
  %v286 = vpop.f32.mrb[0].mxu0
  %v287 = vpop.f32.mrb[0].mxu0
  %v288 = vadd.f32 %v184, %v287
  %v289 = vpop.f32.mrb[0].mxu0
  %290 = vmatprep.mubr.bf16.mxu0 0
  %291 = vmatmul.mubr.bf16.gmra.mrb[0].mxu0 %v162
  %v292 = vpop.f32.mrb[0].mxu0
  %v293 = vadd.f32 %v184, %v292
  %v294 = vpop.f32.mrb[0].mxu0
  %v295 = vpop.f32.mrb[0].mxu0
  %v296 = vadd.f32 %v184, %v295
  %v297 = vpop.f32.mrb[0].mxu0
  %298 = vdwg.mxu0
  %vm299 = vcmp.gt.f32.partialorder %v269, 0.0
  %vm300 = vcmp.gt.f32.partialorder %v272, 0.0
  %vm301 = vcmp.gt.f32.partialorder %v277, 0.0
  %vm302 = vcmp.gt.f32.partialorder %v280, 0.0
  %vm303 = vcmp.gt.f32.partialorder %v285, 0.0
  %vm304 = vcmp.gt.f32.partialorder %v288, 0.0
  %vm305 = vcmp.gt.f32.partialorder %v293, 0.0
  %vm306 = vcmp.gt.f32.partialorder %v296, 0.0
  %v307 = vmul.f32 %v269, 0.2
  %v308 = vmul.f32 %v272, 0.2
  %v309 = vmul.f32 %v277, 0.2
  %v310 = vmul.f32 %v280, 0.2
  %v311 = vmul.f32 %v285, 0.2
  %v312 = vmul.f32 %v288, 0.2
  %v313 = vmul.f32 %v293, 0.2
  %v314 = vmul.f32 %v296, 0.2
  %v315 = vsel %vm299, %v269, %v307
  %v316 = vsel %vm300, %v272, %v308
  %v317 = vsel %vm301, %v277, %v309
  %v318 = vsel %vm302, %v280, %v310
  %v319 = vsel %vm303, %v285, %v311
  %v320 = vsel %vm304, %v288, %v312
  %v321 = vsel %vm305, %v293, %v313
  %v322 = vsel %vm306, %v296, %v314
  %v323 = vpack.c.bf16 %v316, %v315
  %v324 = vpack.c.bf16 %v318, %v317
  %v325 = vpack.c.bf16 %v320, %v319
  %v326 = vpack.c.bf16 %v322, %v321
  %v327 = vld [vmem:[%s5] sm:$0xf]
  %v328 = vld [vmem:[%s5 + $0x4] sm:$0xf]
  %v329 = vld [vmem:[%s5 + $0x8] sm:$0xf]
  %v330 = vld [vmem:[%s5 + $0xc] sm:$0xf]
  %v331 = vld [vmem:[%s5 + $0x10] sm:$0xf]
  %v332 = vld [vmem:[%s5 + $0x14] sm:$0xf]
  %v333 = vld [vmem:[%s5 + $0x18] sm:$0xf]
  %v334 = vld [vmem:[%s5 + $0x1c] sm:$0xf]
  %v335 = vld [vmem:[%s5 + $0x20] sm:$0xf]
  %v336 = vld [vmem:[%s5 + $0x24] sm:$0xf]
  %v337 = vld [vmem:[%s5 + $0x28] sm:$0xf]
  %v338 = vld [vmem:[%s5 + $0x2c] sm:$0xf]
  %v339 = vld [vmem:[%s5 + $0x30] sm:$0xf]
  %v340 = vld [vmem:[%s5 + $0x34] sm:$0xf]
  %v341 = vld [vmem:[%s5 + $0x38] sm:$0xf]
  %v342 = vld [vmem:[%s5 + $0x3c] sm:$0xf]
  %v343 = vld [vmem:[%s6] sm:$0x1]
  %v345 = vlaneseq
  %v346 = vshrl.u32 %v345, 7
  %v347 = vsub.s32 0, %v346
  %v348 = vrot.slane %v343, %v347
  %v366 = vunpack.c.l.b16 %v327
  %v367 = vunpack.c.l.b16 %v328
  %v368 = vunpack.c.l.b16 %v329
  %v369 = vunpack.c.l.b16 %v330
  %v370 = vunpack.c.l.b16 %v331
  %v371 = vunpack.c.l.b16 %v332
  %v372 = vunpack.c.l.b16 %v333
  %v373 = vunpack.c.l.b16 %v334
  %v374 = vunpack.c.l.b16 %v335
  %v375 = vunpack.c.l.b16 %v336
  %v376 = vunpack.c.l.b16 %v337
  %v377 = vunpack.c.l.b16 %v338
  %v378 = vunpack.c.l.b16 %v339
  %v379 = vunpack.c.l.b16 %v340
  %v380 = vunpack.c.l.b16 %v341
  %v381 = vunpack.c.l.b16 %v342
  %v382 = vpack.c.b16 %v367, %v366
  %v383 = vpack.c.b16 %v369, %v368
  %v384 = vpack.c.b16 %v371, %v370
  %v385 = vpack.c.b16 %v373, %v372
  %v386 = vpack.c.b16 %v375, %v374
  %v387 = vpack.c.b16 %v377, %v376
  %v388 = vpack.c.b16 %v379, %v378
  %v389 = vpack.c.b16 %v381, %v380
  %398 = vmatprep.subr.bf16.mxu0 0
  %399 = vmatpush1.bf16.msra.mxu0 %v382
  %400 = vmatprep.subr.bf16.mxu0 0
  %401 = vmatpush1.bf16.msra.mxu0 %v383
  %402 = vmatprep.subr.bf16.mxu0 0
  %403 = vmatpush1.bf16.msra.mxu0 %v384
  %404 = vmatprep.subr.bf16.mxu0 0
  %405 = vmatpush1.bf16.msra.mxu0 %v385
  %406 = vmatprep.subr.bf16.mxu0 0
  %407 = vmatpush1.bf16.msra.mxu0 %v386
  %408 = vmatprep.subr.bf16.mxu0 0
  %409 = vmatpush1.bf16.msra.mxu0 %v387
  %410 = vmatprep.subr.bf16.mxu0 0
  %411 = vmatpush1.bf16.msra.mxu0 %v388
  %412 = vmatprep.subr.bf16.mxu0 0
  %413 = vmatpush1.bf16.msra.mxu0 %v389
  %414 = vmatprep.subr.bf16.mxu0 0
  %415 = vmatpush1.bf16.msra.mxu0 0
  %416 = vmatprep.subr.bf16.mxu0 0
  %417 = vmatpush1.bf16.msra.mxu0 0
  %418 = vmatprep.subr.bf16.mxu0 0
  %419 = vmatpush1.bf16.msra.mxu0 0
  %420 = vmatprep.subr.bf16.mxu0 0
  %421 = vmatpush1.bf16.msra.mxu0 0
  %422 = vmatprep.subr.bf16.mxu0 0
  %423 = vmatpush1.bf16.msra.mxu0 0
  %424 = vmatprep.subr.bf16.mxu0 0
  %425 = vmatpush1.bf16.msra.mxu0 0
  %426 = vmatprep.subr.bf16.mxu0 0
  %427 = vmatpush1.bf16.msra.mxu0 0
  %428 = vmatprep.subr.bf16.mxu0 0
  %429 = vmatpush1.bf16.msra.mxu0 0
  %430 = vmatprep.mubr.bf16.mxu0 0
  %431 = vmatmul.mubr.bf16.gmra.mrb[0].mxu0 %v323
  %v432 = vpop.f32.mrb[0].mxu0
  %v433 = vadd.f32 %v348, %v432
  %v434 = vpop.f32.mrb[0].mxu0
  %v435 = vpop.f32.mrb[0].mxu0
  %v436 = vadd.f32 %v348, %v435
  %v437 = vpop.f32.mrb[0].mxu0
  %438 = vmatprep.mubr.bf16.mxu0 0
  %439 = vmatmul.mubr.bf16.gmra.mrb[0].mxu0 %v324
  %v440 = vpop.f32.mrb[0].mxu0
  %v441 = vadd.f32 %v348, %v440
  %v442 = vpop.f32.mrb[0].mxu0
  %v443 = vpop.f32.mrb[0].mxu0
  %v444 = vadd.f32 %v348, %v443
  %v445 = vpop.f32.mrb[0].mxu0
  %446 = vmatprep.mubr.bf16.mxu0 0
  %447 = vmatmul.mubr.bf16.gmra.mrb[0].mxu0 %v325
  %v448 = vpop.f32.mrb[0].mxu0
  %v449 = vadd.f32 %v348, %v448
  %v450 = vpop.f32.mrb[0].mxu0
  %v451 = vpop.f32.mrb[0].mxu0
  %v452 = vadd.f32 %v348, %v451
  %v453 = vpop.f32.mrb[0].mxu0
  %454 = vmatprep.mubr.bf16.mxu0 0
  %455 = vmatmul.mubr.bf16.gmra.mrb[0].mxu0 %v326
  %v456 = vpop.f32.mrb[0].mxu0
  %v457 = vadd.f32 %v348, %v456
  %v458 = vpop.f32.mrb[0].mxu0
  %v459 = vpop.f32.mrb[0].mxu0
  %v460 = vadd.f32 %v348, %v459
  %v461 = vpop.f32.mrb[0].mxu0
  %462 = vdwg.mxu0
  %vm463 = vcmp.gt.f32.partialorder %v433, 0.0
  %vm464 = vcmp.gt.f32.partialorder %v436, 0.0
  %vm465 = vcmp.gt.f32.partialorder %v441, 0.0
  %vm466 = vcmp.gt.f32.partialorder %v444, 0.0
  %vm467 = vcmp.gt.f32.partialorder %v449, 0.0
  %vm468 = vcmp.gt.f32.partialorder %v452, 0.0
  %vm469 = vcmp.gt.f32.partialorder %v457, 0.0
  %vm470 = vcmp.gt.f32.partialorder %v460, 0.0
  %v471 = vmul.f32 %v433, 0.2
  %v472 = vmul.f32 %v436, 0.2
  %v473 = vmul.f32 %v441, 0.2
  %v474 = vmul.f32 %v444, 0.2
  %v475 = vmul.f32 %v449, 0.2
  %v476 = vmul.f32 %v452, 0.2
  %v477 = vmul.f32 %v457, 0.2
  %v478 = vmul.f32 %v460, 0.2
  %v479 = vsel %vm463, %v433, %v471
  %v480 = vsel %vm464, %v436, %v472
  %v481 = vsel %vm465, %v441, %v473
  %v482 = vsel %vm466, %v444, %v474
  %v483 = vsel %vm467, %v449, %v475
  %v484 = vsel %vm468, %v452, %v476
  %v485 = vsel %vm469, %v457, %v477
  %v486 = vsel %vm470, %v460, %v478
  %v487 = vpack.c.bf16 %v480, %v479
  %v488 = vpack.c.bf16 %v482, %v481
  %v489 = vpack.c.bf16 %v484, %v483
  %v490 = vpack.c.bf16 %v486, %v485
  %v491 = vld [vmem:[%s7] sm:$0xf]
  %v492 = vld [vmem:[%s7 + $0x4] sm:$0xf]
  %v493 = vld [vmem:[%s7 + $0x8] sm:$0xf]
  %v494 = vld [vmem:[%s7 + $0xc] sm:$0xf]
  %v495 = vld [vmem:[%s7 + $0x10] sm:$0xf]
  %v496 = vld [vmem:[%s7 + $0x14] sm:$0xf]
  %v497 = vld [vmem:[%s7 + $0x18] sm:$0xf]
  %v498 = vld [vmem:[%s7 + $0x1c] sm:$0xf]
  %v499 = vld [vmem:[%s7 + $0x20] sm:$0xf]
  %v500 = vld [vmem:[%s7 + $0x24] sm:$0xf]
  %v501 = vld [vmem:[%s7 + $0x28] sm:$0xf]
  %v502 = vld [vmem:[%s7 + $0x2c] sm:$0xf]
  %v503 = vld [vmem:[%s7 + $0x30] sm:$0xf]
  %v504 = vld [vmem:[%s7 + $0x34] sm:$0xf]
  %v505 = vld [vmem:[%s7 + $0x38] sm:$0xf]
  %v506 = vld [vmem:[%s7 + $0x3c] sm:$0xf]
  %v507 = vld [vmem:[%s8] sm:$0x1]
  %v509 = vlaneseq
  %v510 = vshrl.u32 %v509, 7
  %v511 = vsub.s32 0, %v510
  %v512 = vrot.slane %v507, %v511
  %v530 = vunpack.c.l.b16 %v491
  %v531 = vunpack.c.l.b16 %v492
  %v532 = vunpack.c.l.b16 %v493
  %v533 = vunpack.c.l.b16 %v494
  %v534 = vunpack.c.l.b16 %v495
  %v535 = vunpack.c.l.b16 %v496
  %v536 = vunpack.c.l.b16 %v497
  %v537 = vunpack.c.l.b16 %v498
  %v538 = vunpack.c.l.b16 %v499
  %v539 = vunpack.c.l.b16 %v500
  %v540 = vunpack.c.l.b16 %v501
  %v541 = vunpack.c.l.b16 %v502
  %v542 = vunpack.c.l.b16 %v503
  %v543 = vunpack.c.l.b16 %v504
  %v544 = vunpack.c.l.b16 %v505
  %v545 = vunpack.c.l.b16 %v506
  %v546 = vpack.c.b16 %v531, %v530
  %v547 = vpack.c.b16 %v533, %v532
  %v548 = vpack.c.b16 %v535, %v534
  %v549 = vpack.c.b16 %v537, %v536
  %v550 = vpack.c.b16 %v539, %v538
  %v551 = vpack.c.b16 %v541, %v540
  %v552 = vpack.c.b16 %v543, %v542
  %v553 = vpack.c.b16 %v545, %v544
  %562 = vmatprep.subr.bf16.mxu0 0
  %563 = vmatpush1.bf16.msra.mxu0 %v546
  %564 = vmatprep.subr.bf16.mxu0 0
  %565 = vmatpush1.bf16.msra.mxu0 %v547
  %566 = vmatprep.subr.bf16.mxu0 0
  %567 = vmatpush1.bf16.msra.mxu0 %v548
  %568 = vmatprep.subr.bf16.mxu0 0
  %569 = vmatpush1.bf16.msra.mxu0 %v549
  %570 = vmatprep.subr.bf16.mxu0 0
  %571 = vmatpush1.bf16.msra.mxu0 %v550
  %572 = vmatprep.subr.bf16.mxu0 0
  %573 = vmatpush1.bf16.msra.mxu0 %v551
  %574 = vmatprep.subr.bf16.mxu0 0
  %575 = vmatpush1.bf16.msra.mxu0 %v552
  %576 = vmatprep.subr.bf16.mxu0 0
  %577 = vmatpush1.bf16.msra.mxu0 %v553
  %578 = vmatprep.subr.bf16.mxu0 0
  %579 = vmatpush1.bf16.msra.mxu0 0
  %580 = vmatprep.subr.bf16.mxu0 0
  %581 = vmatpush1.bf16.msra.mxu0 0
  %582 = vmatprep.subr.bf16.mxu0 0
  %583 = vmatpush1.bf16.msra.mxu0 0
  %584 = vmatprep.subr.bf16.mxu0 0
  %585 = vmatpush1.bf16.msra.mxu0 0
  %586 = vmatprep.subr.bf16.mxu0 0
  %587 = vmatpush1.bf16.msra.mxu0 0
  %588 = vmatprep.subr.bf16.mxu0 0
  %589 = vmatpush1.bf16.msra.mxu0 0
  %590 = vmatprep.subr.bf16.mxu0 0
  %591 = vmatpush1.bf16.msra.mxu0 0
  %592 = vmatprep.subr.bf16.mxu0 0
  %593 = vmatpush1.bf16.msra.mxu0 0
  %594 = vmatprep.mubr.bf16.mxu0 0
  %595 = vmatmul.mubr.bf16.gmra.mrb[0].mxu0 %v487
  %v596 = vpop.f32.mrb[0].mxu0
  %v597 = vadd.f32 %v512, %v596
  %v598 = vpop.f32.mrb[0].mxu0
  %v599 = vpop.f32.mrb[0].mxu0
  %v600 = vadd.f32 %v512, %v599
  %v601 = vpop.f32.mrb[0].mxu0
  %602 = vmatprep.mubr.bf16.mxu0 0
  %603 = vmatmul.mubr.bf16.gmra.mrb[0].mxu0 %v488
  %v604 = vpop.f32.mrb[0].mxu0
  %v605 = vadd.f32 %v512, %v604
  %v606 = vpop.f32.mrb[0].mxu0
  %v607 = vpop.f32.mrb[0].mxu0
  %v608 = vadd.f32 %v512, %v607
  %v609 = vpop.f32.mrb[0].mxu0
  %610 = vmatprep.mubr.bf16.mxu0 0
  %611 = vmatmul.mubr.bf16.gmra.mrb[0].mxu0 %v489
  %v612 = vpop.f32.mrb[0].mxu0
  %v613 = vadd.f32 %v512, %v612
  %v614 = vpop.f32.mrb[0].mxu0
  %v615 = vpop.f32.mrb[0].mxu0
  %v616 = vadd.f32 %v512, %v615
  %v617 = vpop.f32.mrb[0].mxu0
  %618 = vmatprep.mubr.bf16.mxu0 0
  %619 = vmatmul.mubr.bf16.gmra.mrb[0].mxu0 %v490
  %v620 = vpop.f32.mrb[0].mxu0
  %v621 = vadd.f32 %v512, %v620
  %v622 = vpop.f32.mrb[0].mxu0
  %v623 = vpop.f32.mrb[0].mxu0
  %v624 = vadd.f32 %v512, %v623
  %v625 = vpop.f32.mrb[0].mxu0
  %626 = vdwg.mxu0
  %627 = vst [vmem:[%s9] sm:$0xff] %v597
  %628 = vst [vmem:[%s9 + $0x8] sm:$0xff] %v600
  %629 = vst [vmem:[%s9 + $0x10] sm:$0xff] %v605
  %630 = vst [vmem:[%s9 + $0x18] sm:$0xff] %v608
  %631 = vst [vmem:[%s9 + $0x20] sm:$0xff] %v613
  %632 = vst [vmem:[%s9 + $0x28] sm:$0xff] %v616
  %633 = vst [vmem:[%s9 + $0x30] sm:$0xff] %v621
  %634 = vst [vmem:[%s9 + $0x38] sm:$0xff] %v624
  // Predicated region
  $region38: #{my_generator_forward.1} parent=0 // pred_check
    _
  $region39: #{my_generator_forward.1} parent=0 // pred_check_branch
    %636 = sbr.rel (0) target = $region41
  $region40: #{my_generator_forward.1} parent=0 // pred_region
    _
  $region41: #{my_generator_forward.1} parent=0 // pred_fallthru
    _
  // Predicated region
  $region42: #{my_generator_forward.1} parent=0 // pred_check
    _
  $region43: #{my_generator_forward.1} parent=0 // pred_check_branch
    %638 = sbr.rel (0) target = $region45
  $region44: #{my_generator_forward.1} parent=0 // pred_region
    _
  $region45: #{my_generator_forward.1} parent=0 // pred_fallthru
    _

</llo_original>
